<compile_context>
chip_gen: v7x
topology: tpu7x:2x2x1
jax: 0.10.0
libtpu: 0.0.40
codegen_flags: <defaults>
</compile_context>

<pallas_src>
import jax
import jax.numpy as jnp
from jax.experimental import pallas as pl
from jax.experimental.pallas import tpu as pltpu


def _round_up(x, m):
    return (x + m - 1) // m * m


def policy_kernel(x_ref, w1_ref, b1_ref, w2_ref, b2_ref, out_ref):
    """One batch tile: softmax(relu(x @ w1 + b1) @ w2 + b2) over valid actions."""
    # bf16 operands into the MXU (native rate on v6e/v7x), f32 accumulation.
    x = x_ref[...].astype(jnp.bfloat16)
    h = jnp.dot(x, w1_ref[...], preferred_element_type=jnp.float32) + b1_ref[...]
    h = jnp.maximum(h, 0.0)
    logits = (
        jnp.dot(h.astype(jnp.bfloat16), w2_ref[...],
                preferred_element_type=jnp.float32)
        + b2_ref[...]
    )
    # Padded action columns carry a -1e30 bias (and zero weights), so they
    # contribute exp(...) == 0 to the softmax denominator -- no mask ops needed.
    m = jnp.max(logits, axis=1, keepdims=True)
    e = jnp.exp(logits - m)
    denom = jnp.sum(e, axis=1, keepdims=True)
    probs = e / denom  # exact divide: rows sum to 1; kernel is not VALU-bound
    # Store only the real action columns (un-padded output block -> ~64x fewer
    # HBM writeback bytes than the lane-padded slab).
    out_ref[...] = probs[:, : out_ref.shape[1]].astype(out_ref.dtype)


def prepare_params(w1, b1, w2, b2):
    """Pad / cast parameters ONCE (not per forward call).

    Hidden and action dims are zero-padded to the 128-lane vreg width so both
    matmuls are lane-dense; padded action columns get a -1e30 bias so they
    vanish in the in-kernel softmax.
    """
    s, h = w1.shape
    a = w2.shape[1]
    h_pad = _round_up(h, 128)
    a_pad = _round_up(a, 128)
    f32, bf16 = jnp.float32, jnp.bfloat16
    w1p = jnp.zeros((s, h_pad), bf16).at[:, :h].set(w1.astype(bf16))
    b1p = jnp.zeros((1, h_pad), f32).at[:, :h].set(jnp.reshape(b1, (1, h)).astype(f32))
    w2p = jnp.zeros((h_pad, a_pad), bf16).at[:h, :a].set(w2.astype(bf16))
    b2p = jnp.full((1, a_pad), -1e30, f32).at[:, :a].set(
        jnp.reshape(b2, (1, a)).astype(f32))
    return (w1p, b1p, w2p, b2p, a)


def policy_forward(state, params, *, block_b=4096):
    """probs = softmax(relu(state @ w1 + b1) @ w2 + b2, axis=1)."""
    w1p, b1p, w2p, b2p, a = params
    B, s = state.shape
    h_pad = w1p.shape[1]
    a_pad = w2p.shape[1]

    # Pad batch only to the 8-sublane minimum, and only if actually needed --
    # no full re-copy of the activations to a tile-sized pad.
    b_pad = _round_up(B, 8)
    x = state if b_pad == B else jnp.zeros((b_pad, s), state.dtype).at[:B].set(state)

    # Large batch tile (fewer ~0.35us grid steps) but capped at ~ceil(B/2) so
    # the "parallel" axis keeps >=2 steps for v7x's two TensorCores. Shrink to
    # a divisor of b_pad so every tile is full (no ragged/OOB blocks).
    tb = max(8, min(_round_up(block_b, 8), _round_up(pl.cdiv(b_pad, 2), 8)))
    tb = min(tb, b_pad)
    while b_pad % tb:
        tb -= 8
    grid = (b_pad // tb,)

    vmem = pltpu.MemorySpace.VMEM
    cost = pl.CostEstimate(
        flops=2 * b_pad * (s * h_pad + h_pad * a_pad),
        transcendentals=b_pad * a_pad,  # exp
        bytes_accessed=(
            4 * (x.size + b1p.size + b2p.size + b_pad * a)  # f32 acts/bias/out
            + 2 * (w1p.size + w2p.size)                      # bf16 weights
        ),
    )

    out = pl.pallas_call(
        policy_kernel,
        out_shape=jax.ShapeDtypeStruct((b_pad, a), jnp.float32),
        grid=grid,
        in_specs=[
            # Activations: tiled over batch -> pipelined / double-buffered.
            pl.BlockSpec((tb, s), lambda i: (i, 0), memory_space=vmem),
            # Parameters: same block every grid step -> stay resident in VMEM.
            pl.BlockSpec((s, h_pad), lambda i: (0, 0), memory_space=vmem),
            pl.BlockSpec((1, h_pad), lambda i: (0, 0), memory_space=vmem),
            pl.BlockSpec((h_pad, a_pad), lambda i: (0, 0), memory_space=vmem),
            pl.BlockSpec((1, a_pad), lambda i: (0, 0), memory_space=vmem),
        ],
        # Un-padded (tb, a) output block: last dim equals the full array dim,
        # so it satisfies the tiling rule while writing only useful bytes.
        out_specs=pl.BlockSpec((tb, a), lambda i: (i, 0), memory_space=vmem),
        compiler_params=pltpu.CompilerParams(
            # Batch tiles are independent -> megacore sharding on v7x.
            dimension_semantics=("parallel",),
        ),
        cost_estimate=cost,
    )(x, w1p, b1p, w2p, b2p)

    # Slice only when batch padding actually happened.
    return out if b_pad == B else out[:B]


def init_params(key, s=4, h=16, a=2):
    # Deterministic init mimicking nn.Linear's U(-1/sqrt(fan_in), 1/sqrt(fan_in)).
    k1, k2, k3, k4 = jax.random.split(key, 4)
    lim1 = 1.0 / jnp.sqrt(s)
    lim2 = 1.0 / jnp.sqrt(h)
    w1 = jax.random.uniform(k1, (s, h), jnp.float32, -lim1, lim1)
    b1 = jax.random.uniform(k2, (1, h), jnp.float32, -lim1, lim1)
    w2 = jax.random.uniform(k3, (h, a), jnp.float32, -lim2, lim2)
    b2 = jax.random.uniform(k4, (1, a), jnp.float32, -lim2, lim2)
    return w1, b1, w2, b2


def reference_forward(state, w1, b1, w2, b2):
    h = jnp.maximum(state @ w1 + b1, 0.0)
    return jax.nn.softmax(h @ w2 + b2, axis=1)


# TODO(synk): choose_action (Categorical sampling + log_prob) is host-side RNG
# control flow; it could be fused in-kernel with pltpu.prng_seed/prng_random_bits
# later, but is intentionally left out to preserve forward() semantics.

if __name__ == "__main__":
    key = jax.random.PRNGKey(0)
    k_x, k_p, k_x2 = jax.random.split(key, 3)

    B, S, H, A = 2, 4, 16, 2
    state = jax.random.normal(k_x, (B, S), jnp.float32)
    w1, b1, w2, b2 = init_params(k_p, S, H, A)
    params = prepare_params(w1, b1, w2, b2)  # pad/cast ONCE, not per call

    probs = jax.block_until_ready(policy_forward(state, params))
    ref = reference_forward(state, w1, b1, w2, b2)

    assert probs.shape == (B, A)
    # bf16 MXU operands -> loosened tolerance vs the f32 reference.
    assert jnp.allclose(probs, ref, atol=3e-2), (probs, ref)
    assert jnp.allclose(jnp.sum(probs, axis=1), 1.0, atol=1e-3)

    # Multi-tile grid (3 tiles of 16 rows) exercising the pipelined path.
    B2 = 48
    state2 = jax.random.normal(k_x2, (B2, S), jnp.float32)
    probs2 = jax.block_until_ready(policy_forward(state2, params, block_b=16))
    ref2 = reference_forward(state2, w1, b1, w2, b2)
    assert probs2.shape == (B2, A)
    assert jnp.allclose(probs2, ref2, atol=3e-2), (probs2, ref2)
    assert jnp.allclose(jnp.sum(probs2, axis=1), 1.0, atol=1e-3)

    # Default (large-tile) path: tb capped at ceil(B/2) -> 2 parallel grid steps.
    probs3 = jax.block_until_ready(policy_forward(state2, params))
    assert jnp.allclose(probs3, ref2, atol=3e-2), (probs3, ref2)

    print("KERNEL_OK")
</pallas_src>

<mosaic_0001>
module attributes {stable_mosaic.version = 11 : i64} {
  func.func @policy_kernel(%arg0: i32, %arg1: memref<8x4xf32, #tpu.memory_space<vmem>>, %arg2: memref<4x128xbf16, #tpu.memory_space<vmem>>, %arg3: memref<1x128xf32, #tpu.memory_space<vmem>>, %arg4: memref<128x128xbf16, #tpu.memory_space<vmem>>, %arg5: memref<1x128xf32, #tpu.memory_space<vmem>>, %arg6: memref<8x2xf32, #tpu.memory_space<vmem>>) attributes {dimension_semantics = [#tpu.dimension_semantics<parallel>], iteration_bounds = array<i64: 1>, scalar_prefetch = 0 : i64, scratch_operands = 0 : i64, tpu.core_type = #tpu.core_type<tc>, window_params = [{transform_indices = @transform_0, window_bounds = array<i64: 8, 4>}, {pipeline_mode = #tpu.pipeline_mode<synchronous>, transform_indices = @transform_1, window_bounds = array<i64: 4, 128>}, {pipeline_mode = #tpu.pipeline_mode<synchronous>, transform_indices = @transform_2, window_bounds = array<i64: 1, 128>}, {pipeline_mode = #tpu.pipeline_mode<synchronous>, transform_indices = @transform_3, window_bounds = array<i64: 128, 128>}, {pipeline_mode = #tpu.pipeline_mode<synchronous>, transform_indices = @transform_4, window_bounds = array<i64: 1, 128>}, {transform_indices = @transform_5, window_bounds = array<i64: 8, 2>}]} {
    %c0 = arith.constant 0 : index
    %c0_0 = arith.constant 0 : index
    %0 = vector.load %arg1[%c0, %c0_0] : memref<8x4xf32, #tpu.memory_space<vmem>>, vector<8x4xf32>
    %1 = arith.truncf %0 : vector<8x4xf32> to vector<8x4xbf16>
    %c0_1 = arith.constant 0 : index
    %c0_2 = arith.constant 0 : index
    %2 = vector.load %arg2[%c0_1, %c0_2] : memref<4x128xbf16, #tpu.memory_space<vmem>>, vector<4x128xbf16>
    %cst = arith.constant dense<0.000000e+00> : vector<8x128xf32>
    %3 = tpu.matmul %1, %2, %cst {dimension_numbers = #tpu.dot_dimension_numbers<[1], [0], [0], [1], [0, 0, 1, 1], [], []>} : vector<8x4xbf16>, vector<4x128xbf16>, vector<8x128xf32> -> vector<8x128xf32>
    %c0_3 = arith.constant 0 : index
    %c0_4 = arith.constant 0 : index
    %4 = vector.load %arg3[%c0_3, %c0_4] : memref<1x128xf32, #tpu.memory_space<vmem>>, vector<1x128xf32>
    %5 = vector.broadcast %4 : vector<1x128xf32> to vector<8x128xf32>
    %6 = arith.addf %3, %5 : vector<8x128xf32>
    %cst_5 = arith.constant 0.000000e+00 : f32
    %7 = vector.broadcast %cst_5 : f32 to vector<8x128xf32>
    %8 = arith.maximumf %6, %7 : vector<8x128xf32>
    %9 = arith.truncf %8 : vector<8x128xf32> to vector<8x128xbf16>
    %c0_6 = arith.constant 0 : index
    %c0_7 = arith.constant 0 : index
    %10 = vector.load %arg4[%c0_6, %c0_7] : memref<128x128xbf16, #tpu.memory_space<vmem>>, vector<128x128xbf16>
    %cst_8 = arith.constant dense<0.000000e+00> : vector<8x128xf32>
    %11 = tpu.matmul %9, %10, %cst_8 {dimension_numbers = #tpu.dot_dimension_numbers<[1], [0], [0], [1], [0, 0, 1, 1], [], []>} : vector<8x128xbf16>, vector<128x128xbf16>, vector<8x128xf32> -> vector<8x128xf32>
    %c0_9 = arith.constant 0 : index
    %c0_10 = arith.constant 0 : index
    %12 = vector.load %arg5[%c0_9, %c0_10] : memref<1x128xf32, #tpu.memory_space<vmem>>, vector<1x128xf32>
    %13 = vector.broadcast %12 : vector<1x128xf32> to vector<8x128xf32>
    %14 = arith.addf %11, %13 : vector<8x128xf32>
    %cst_11 = arith.constant dense<0xFF800000> : vector<8xf32>
    %15 = vector.multi_reduction <maximumf>, %14, %cst_11 [1] : vector<8x128xf32> to vector<8xf32>
    %16 = vector.shape_cast %15 : vector<8xf32> to vector<8x1xf32>
    %17 = vector.broadcast %16 : vector<8x1xf32> to vector<8x128xf32>
    %18 = arith.subf %14, %17 : vector<8x128xf32>
    %19 = math.exp %18 : vector<8x128xf32>
    %cst_12 = arith.constant dense<0.000000e+00> : vector<8xf32>
    %20 = vector.multi_reduction <add>, %19, %cst_12 [1] : vector<8x128xf32> to vector<8xf32>
    %21 = vector.shape_cast %20 : vector<8xf32> to vector<8x1xf32>
    %22 = vector.broadcast %21 : vector<8x1xf32> to vector<8x128xf32>
    %23 = arith.divf %19, %22 : vector<8x128xf32>
    %24 = vector.extract_strided_slice %23 {offsets = [0, 0], sizes = [8, 2], strides = [1, 1]} : vector<8x128xf32> to vector<8x2xf32>
    %c0_13 = arith.constant 0 : index
    %c0_14 = arith.constant 0 : index
    %25 = vector.load %arg6[%c0_13, %c0_14] : memref<8x2xf32, #tpu.memory_space<vmem>>, vector<8x2xf32>
    tpu.vector_store %arg6[%c0_13, %c0_14], %24 {strides = array<i32>} : memref<8x2xf32, #tpu.memory_space<vmem>>, vector<8x2xf32>,
    return
  }
  func.func @transform_0(%arg0: i32) -> (i32, i32) {
    %c0_i32 = arith.constant 0 : i32
    %c0_i32_0 = arith.constant 0 : i32
    return %arg0, %c0_i32 : i32, i32
  }
  func.func @transform_1(%arg0: i32) -> (i32, i32) {
    %c0_i32 = arith.constant 0 : i32
    %c0_i32_0 = arith.constant 0 : i32
    %c0_i32_1 = arith.constant 0 : i32
    return %c0_i32, %c0_i32_0 : i32, i32
  }
  func.func @transform_2(%arg0: i32) -> (i32, i32) {
    %c0_i32 = arith.constant 0 : i32
    %c0_i32_0 = arith.constant 0 : i32
    %c0_i32_1 = arith.constant 0 : i32
    return %c0_i32, %c0_i32_0 : i32, i32
  }
  func.func @transform_3(%arg0: i32) -> (i32, i32) {
    %c0_i32 = arith.constant 0 : i32
    %c0_i32_0 = arith.constant 0 : i32
    %c0_i32_1 = arith.constant 0 : i32
    return %c0_i32, %c0_i32_0 : i32, i32
  }
  func.func @transform_4(%arg0: i32) -> (i32, i32) {
    %c0_i32 = arith.constant 0 : i32
    %c0_i32_0 = arith.constant 0 : i32
    %c0_i32_1 = arith.constant 0 : i32
    return %c0_i32, %c0_i32_0 : i32, i32
  }
  func.func @transform_5(%arg0: i32) -> (i32, i32) {
    %c0_i32 = arith.constant 0 : i32
    %c0_i32_0 = arith.constant 0 : i32
    return %arg0, %c0_i32 : i32, i32
  }
}

</mosaic_0001>

<llo_original>
// kernel: tpu_custom_call.1
$region0: #{tpu_custom_call.1}
  #allocation0 [shape = 'u32[]', space=smem, size = 0x4, offset = 0x4, fixed_abs, tag = 'smem constant byte address 0x4 - core index']
  #allocation1 [shape = 'u32[144,128]{1,0:T(1,128)}', space=vmem, size = 0x12000, scoped, tag = 'internal scratch']
  %s0 = inlined_call_operand.vmem [shape: f32[8,4], index: 0, kind: input, shape index: {}]
  %s1 = inlined_call_operand.vmem [shape: bf16[4,128], index: 1, kind: input, shape index: {}]
  %s2 = inlined_call_operand.vmem [shape: f32[1,128], index: 2, kind: input, shape index: {}]
  %s3 = inlined_call_operand.hbm [shape: bf16[128,128], index: 3, kind: input, shape index: {}]
  %s4 = inlined_call_operand.vmem [shape: f32[1,128], index: 4, kind: input, shape index: {}]
  %s5 = inlined_call_operand.vmem [shape: f32[8,2], index: 5, kind: output, shape index: {}]
  %s6 = sld [smem:[#allocation0]]
  $region34: #{tpu_custom_call.1} parent=0
    _
  %s8 = ssub.s32 1, %s6
  %s9 = scalar_select 0, %s8, %s6
  $region1: #{tpu_custom_call.1} parent=0
    #allocation2 [shape = 'u8[32768]{0}', space=vmem, size = 0x8000, scoped, tag = 'input window, operand 3, single buffered']
    #allocation3 [shape = 's32[1]{0}', space=sflag, size = 0x4, scoped, tag = 'scoped memory for tpu_custom_call.1']
    %10 = vsyncpa [#allocation3], 0
    // Predicated region
    $region2: #{tpu_custom_call.1} parent=1 // pred_check
      _
    $region3: #{tpu_custom_call.1} parent=1 // pred_check_branch
      %12 = sbr.rel (0) target = $region5
    $region4: #{tpu_custom_call.1} parent=1 // pred_region
      _
    $region5: #{tpu_custom_call.1} parent=1 // pred_fallthru
      _
    // Predicated region
    $region6: #{tpu_custom_call.1} parent=1 // pred_check
      _
    $region7: #{tpu_custom_call.1} parent=1 // pred_check_branch
      %14 = sbr.rel (0) target = $region9
    $region8: #{tpu_custom_call.1} parent=1 // pred_region
      _
    $region9: #{tpu_custom_call.1} parent=1 // pred_fallthru
      _
    // Predicated region
    $region10: #{tpu_custom_call.1} parent=1 // pred_check
      _
    $region11: #{tpu_custom_call.1} parent=1 // pred_check_branch
      %16 = sbr.rel (0) target = $region13
    $region12: #{tpu_custom_call.1} parent=1 // pred_region
      _
    $region13: #{tpu_custom_call.1} parent=1 // pred_fallthru
      _
    // Predicated region
    $region14: #{tpu_custom_call.1} parent=1 // pred_check
      _
    $region15: #{tpu_custom_call.1} parent=1 // pred_check_branch
      %18 = sbr.rel (0) target = $region17
    $region16: #{tpu_custom_call.1} parent=1 // pred_region
      %s20 = ssub.s32 1024, 1024
      %21 = vsyncadd [#allocation3], %s20
      %s22 = sshll.u32 [#allocation2], 4
      %s23 = int_to_ptr.vmem [resolvable:$true] %s22
      %28 = dma.hbm_to_vmem [thread:$0]  %s3, 1024, %s23, [#allocation3], 64, 64, 4
    $region17: #{tpu_custom_call.1} parent=1 // pred_fallthru
      _
    // Predicated region
    $region18: #{tpu_custom_call.1} parent=1 // pred_check
      _
    $region19: #{tpu_custom_call.1} parent=1 // pred_check_branch
      %30 = sbr.rel (0) target = $region21
    $region20: #{tpu_custom_call.1} parent=1 // pred_region
      _
    $region21: #{tpu_custom_call.1} parent=1 // pred_fallthru
      _
    // Predicated region
    $region22: #{tpu_custom_call.1} parent=1 // pred_check
      _
    $region23: #{tpu_custom_call.1} parent=1 // pred_check_branch
      %32 = sbr.rel (0) target = $region25
    $region24: #{tpu_custom_call.1} parent=1 // pred_region
      %33 = dma.done [#allocation3], 1024
    $region25: #{tpu_custom_call.1} parent=1 // pred_fallthru
      _
    %v35 = vld [vmem:[%s0] sm:$0xff]
    %v36 = vpack.c.bf16 %v35, %v35
    %v37 = vld [vmem:[%s1] sm:$0x3]
    %v38 = vld [vmem:[%s2] sm:$0x1]
    %v40 = vlaneseq
    %v41 = vshrl.u32 %v40, 7
    %v42 = vsub.s32 0, %v41
    %v43 = vrot.slane %v38, %v42
    %vm45 = vcmask 31744
    %v47 = vsel %vm45, %v36, 0
    %vm49 = vcmask 1041408
    %v51 = vsel %vm49, %v37, 0
    %53 = vmatprep.subr.bf16.mxu0 0
    %54 = vmatpush1.bf16.msra.mxu0 %v51
    %55 = vmatprep.subr.bf16.mxu0 0
    %56 = vmatpush1.bf16.msra.mxu0 0
    %57 = vmatprep.subr.bf16.mxu0 0
    %58 = vmatpush1.bf16.msra.mxu0 0
    %59 = vmatprep.subr.bf16.mxu0 0
    %60 = vmatpush1.bf16.msra.mxu0 0
    %61 = vmatprep.subr.bf16.mxu0 0
    %62 = vmatpush1.bf16.msra.mxu0 0
    %63 = vmatprep.subr.bf16.mxu0 0
    %64 = vmatpush1.bf16.msra.mxu0 0
    %65 = vmatprep.subr.bf16.mxu0 0
    %66 = vmatpush1.bf16.msra.mxu0 0
    %67 = vmatprep.subr.bf16.mxu0 0
    %68 = vmatpush1.bf16.msra.mxu0 0
    %69 = vmatprep.subr.bf16.mxu0 0
    %70 = vmatpush1.bf16.msra.mxu0 0
    %71 = vmatprep.subr.bf16.mxu0 0
    %72 = vmatpush1.bf16.msra.mxu0 0
    %73 = vmatprep.subr.bf16.mxu0 0
    %74 = vmatpush1.bf16.msra.mxu0 0
    %75 = vmatprep.subr.bf16.mxu0 0
    %76 = vmatpush1.bf16.msra.mxu0 0
    %77 = vmatprep.subr.bf16.mxu0 0
    %78 = vmatpush1.bf16.msra.mxu0 0
    %79 = vmatprep.subr.bf16.mxu0 0
    %80 = vmatpush1.bf16.msra.mxu0 0
    %81 = vmatprep.subr.bf16.mxu0 0
    %82 = vmatpush1.bf16.msra.mxu0 0
    %83 = vmatprep.subr.bf16.mxu0 0
    %84 = vmatpush1.bf16.msra.mxu0 0
    %85 = vmatprep.mubr.bf16.mxu0 0
    %86 = vmatmul.mubr.bf16.gmra.mrb[0].mxu0 %v47
    %v87 = vpop.f32.mrb[0].mxu0
    %v88 = vadd.f32 %v43, %v87
    %v89 = vpop.f32.mrb[0].mxu0
    %v90 = vpop.f32.mrb[0].mxu0
    %v91 = vpop.f32.mrb[0].mxu0
    %92 = vdwg.mxu0
    %v93 = vmax.f32 %v88, 0.0
    %v94 = vpack.c.bf16 %v93, %v93
    %v95 = vld [vmem:[#allocation2] sm:$0xf]
    %v96 = vld [vmem:[#allocation2 + $0x4] sm:$0xf]
    %v97 = vld [vmem:[#allocation2 + $0x8] sm:$0xf]
    %v98 = vld [vmem:[#allocation2 + $0xc] sm:$0xf]
    %v99 = vld [vmem:[#allocation2 + $0x10] sm:$0xf]
    %v100 = vld [vmem:[#allocation2 + $0x14] sm:$0xf]
    %v101 = vld [vmem:[#allocation2 + $0x18] sm:$0xf]
    %v102 = vld [vmem:[#allocation2 + $0x1c] sm:$0xf]
    %v103 = vld [vmem:[#allocation2 + $0x20] sm:$0xf]
    %v104 = vld [vmem:[#allocation2 + $0x24] sm:$0xf]
    %v105 = vld [vmem:[#allocation2 + $0x28] sm:$0xf]
    %v106 = vld [vmem:[#allocation2 + $0x2c] sm:$0xf]
    %v107 = vld [vmem:[#allocation2 + $0x30] sm:$0xf]
    %v108 = vld [vmem:[#allocation2 + $0x34] sm:$0xf]
    %v109 = vld [vmem:[#allocation2 + $0x38] sm:$0xf]
    %v110 = vld [vmem:[#allocation2 + $0x3c] sm:$0xf]
    %v111 = vld [vmem:[%s4] sm:$0x1]
    %v113 = vlaneseq
    %v114 = vshrl.u32 %v113, 7
    %v115 = vsub.s32 0, %v114
    %v116 = vrot.slane %v111, %v115
    %v134 = vunpack.c.l.b16 %v95
    %v135 = vunpack.c.l.b16 %v96
    %v136 = vunpack.c.l.b16 %v97
    %v137 = vunpack.c.l.b16 %v98
    %v138 = vunpack.c.l.b16 %v99
    %v139 = vunpack.c.l.b16 %v100
    %v140 = vunpack.c.l.b16 %v101
    %v141 = vunpack.c.l.b16 %v102
    %v142 = vunpack.c.l.b16 %v103
    %v143 = vunpack.c.l.b16 %v104
    %v144 = vunpack.c.l.b16 %v105
    %v145 = vunpack.c.l.b16 %v106
    %v146 = vunpack.c.l.b16 %v107
    %v147 = vunpack.c.l.b16 %v108
    %v148 = vunpack.c.l.b16 %v109
    %v149 = vunpack.c.l.b16 %v110
    %v150 = vpack.c.b16 %v135, %v134
    %v151 = vpack.c.b16 %v137, %v136
    %v152 = vpack.c.b16 %v139, %v138
    %v153 = vpack.c.b16 %v141, %v140
    %v154 = vpack.c.b16 %v143, %v142
    %v155 = vpack.c.b16 %v145, %v144
    %v156 = vpack.c.b16 %v147, %v146
    %v157 = vpack.c.b16 %v149, %v148
    %166 = vmatprep.subr.bf16.mxu0 0
    %167 = vmatpush1.bf16.msra.mxu0 %v150
    %168 = vmatprep.subr.bf16.mxu0 0
    %169 = vmatpush1.bf16.msra.mxu0 %v151
    %170 = vmatprep.subr.bf16.mxu0 0
    %171 = vmatpush1.bf16.msra.mxu0 %v152
    %172 = vmatprep.subr.bf16.mxu0 0
    %173 = vmatpush1.bf16.msra.mxu0 %v153
    %174 = vmatprep.subr.bf16.mxu0 0
    %175 = vmatpush1.bf16.msra.mxu0 %v154
    %176 = vmatprep.subr.bf16.mxu0 0
    %177 = vmatpush1.bf16.msra.mxu0 %v155
    %178 = vmatprep.subr.bf16.mxu0 0
    %179 = vmatpush1.bf16.msra.mxu0 %v156
    %180 = vmatprep.subr.bf16.mxu0 0
    %181 = vmatpush1.bf16.msra.mxu0 %v157
    %182 = vmatprep.subr.bf16.mxu0 0
    %183 = vmatpush1.bf16.msra.mxu0 0
    %184 = vmatprep.subr.bf16.mxu0 0
    %185 = vmatpush1.bf16.msra.mxu0 0
    %186 = vmatprep.subr.bf16.mxu0 0
    %187 = vmatpush1.bf16.msra.mxu0 0
    %188 = vmatprep.subr.bf16.mxu0 0
    %189 = vmatpush1.bf16.msra.mxu0 0
    %190 = vmatprep.subr.bf16.mxu0 0
    %191 = vmatpush1.bf16.msra.mxu0 0
    %192 = vmatprep.subr.bf16.mxu0 0
    %193 = vmatpush1.bf16.msra.mxu0 0
    %194 = vmatprep.subr.bf16.mxu0 0
    %195 = vmatpush1.bf16.msra.mxu0 0
    %196 = vmatprep.subr.bf16.mxu0 0
    %197 = vmatpush1.bf16.msra.mxu0 0
    %198 = vmatprep.mubr.bf16.mxu0 0
    %199 = vmatmul.mubr.bf16.gmra.mrb[0].mxu0 %v94
    %v200 = vpop.f32.mrb[0].mxu0
    %v201 = vadd.f32 %v116, %v200
    %v202 = vpop.f32.mrb[0].mxu0
    %v203 = vpop.f32.mrb[0].mxu0
    %v204 = vpop.f32.mrb[0].mxu0
    %205 = vdwg.mxu0
    %206 = vmax.xlane.f32.xlu0 %v201
    %v207 = vpop.xlane.xlu0 %206
    %v208 = vsub.f32 %v201, %v207
    %v209 = vmul.f32 %v208, 1.442695
    %v210 = vpow.pop %v209
    %211 = vadd.xlane.f32.xlu0 %v210
    %v212 = vpop.xlane.xlu0 %211
    %v213 = vrcp.pop %v212
    %v214 = vmul.f32 %v210, %v213
    %vm215 = vcmask 15360
    %216 = vst.msk [vmem:[%s5] sm:$0xff] %vm215, %v214
    // Predicated region
    $region26: #{tpu_custom_call.1} parent=1 // pred_check
      _
    $region27: #{tpu_custom_call.1} parent=1 // pred_check_branch
      %218 = sbr.rel (0) target = $region29
    $region28: #{tpu_custom_call.1} parent=1 // pred_region
      _
    $region29: #{tpu_custom_call.1} parent=1 // pred_fallthru
      _
    // Predicated region
    $region30: #{tpu_custom_call.1} parent=1 // pred_check
      _
    $region31: #{tpu_custom_call.1} parent=1 // pred_check_branch
      %220 = sbr.rel (0) target = $region33
    $region32: #{tpu_custom_call.1} parent=1 // pred_region
      _
    $region33: #{tpu_custom_call.1} parent=1 // pred_fallthru
      _
    %221 = vsyncpa [#allocation3], 1

</llo_original>
